<compile_context>
chip_gen: v7x
topology: tpu7x:2x2x1
jax: 0.10.0
libtpu: 0.0.40
codegen_flags: <defaults>
</compile_context>

<pallas_src>
import functools

import jax
import jax.numpy as jnp
from jax.experimental import pallas as pl
from jax.experimental.pallas import tpu as pltpu


def _round_up(x: int, m: int) -> int:
    return ((x + m - 1) // m) * m


def _forward_kernel(idx_ref, wc_ref, w2_ref, out_ref):
    """One batch tile, feature-major (batch on the lane axis).

    idx_ref : (L, TB)  int32   flattened one-hot indices (site*|A| + aa)
    wc_ref  : (hidden, input_size) f32   fused  W1 @ beta
    w2_ref  : (output_size, hidden) f32  output layer weight (PyTorch layout)
    out_ref : (output_size, TB) f32      transposed outputs (lane-dense store)
    """
    idx = idx_ref[...]                      # (L, TB)
    seq_len, tb = idx.shape
    input_size = wc_ref.shape[1]

    # Rebuild the transposed one-hot encoding entirely in vregs (no HBM):
    # onehot_t[f, b] = 1  iff  idx[l, b] == f for some site l.
    feat = jax.lax.broadcasted_iota(jnp.int32, (input_size, tb), 0)
    hot = feat == idx[0:1, :]
    for l in range(1, seq_len):             # static L=8 -> unrolled VPU compares
        hot = jnp.logical_or(hot, feat == idx[l : l + 1, :])
    onehot_t = hot.astype(jnp.float32)      # (input_size, TB)

    # hidden^T = sigmoid(Wc @ x^T) : (hidden, TB)   -- MXU, N-dim lane-dense
    h_t = jax.nn.sigmoid(
        jnp.dot(wc_ref[...], onehot_t, preferred_element_type=jnp.float32)
    )
    # out^T = W2 @ hidden^T : (output_size, TB)     -- lane-dense store
    out_ref[...] = jnp.dot(
        w2_ref[...], h_t, preferred_element_type=jnp.float32
    ).astype(out_ref.dtype)


def prepare_params(beta, w1, w2):
    """One-time parameter prep (do NOT call per forward pass).

    nn.Linear stores weights as (out_features, in_features).  The bias-free
    latent layer is fused into the first nonlinear layer; everything stays
    in the (out, in) orientation because the kernel computes feature-major:
        h^T = sigmoid((W1 @ beta) @ x^T),   y^T = W2 @ h^T
    """
    wc = (w1 @ beta).astype(jnp.float32)    # (hidden, input_size)
    return wc, w2.astype(jnp.float32)       # (output_size, hidden)


@functools.partial(jax.jit, static_argnames=("tb",))
def torchdms_forward(flat_idx, wc, w2, *, tb: int = 8192):
    """Forward pass from flattened one-hot indices.

    flat_idx : (B, L) int32, flat_idx[b, l] = l * |A| + aa_index  (the exact
               indices seq_to_binary sets to 1.0 in the dense encoding)
    wc       : (hidden, input_size)  fused W1 @ beta
    w2       : (output_size, hidden)
    returns  : (B, output_size) f32
    """
    B, L = flat_idx.shape
    hidden, input_size = wc.shape
    output_size = w2.shape[0]

    # Lane-aligned batch tile (multiple of 128), capped at `tb` rows.
    TB = _round_up(min(tb, _round_up(B, 128)), 128)
    B_pad = _round_up(B, TB)

    # Transpose + pad only the tiny index stream (4*L bytes/row); padded
    # columns get index 0 and produce garbage sliced off below.
    idx_t = jnp.transpose(flat_idx.astype(jnp.int32))       # (L, B)
    if B_pad != B:
        idx_t = jnp.pad(idx_t, ((0, 0), (0, B_pad - B)))

    grid = (B_pad // TB,)

    cost = pl.CostEstimate(
        flops=2 * B_pad * (input_size * hidden + hidden * output_size),
        transcendentals=B_pad * hidden,                      # sigmoid
        bytes_accessed=(L + output_size) * B_pad * 4
        + (wc.size + w2.size) * 4,
    )

    out_t = pl.pallas_call(
        _forward_kernel,
        out_shape=jax.ShapeDtypeStruct((output_size, B_pad), jnp.float32),
        grid_spec=pl.GridSpec(
            grid=grid,
            in_specs=[
                # index stream: one lane-dense batch tile per grid step.
                pl.BlockSpec((L, TB), lambda i: (0, i)),
                # weights: tiny resident full-array blocks (constant index_map
                # -> not re-fetched between grid steps).
                pl.BlockSpec((hidden, input_size), lambda i: (0, 0)),
                pl.BlockSpec((output_size, hidden), lambda i: (0, 0)),
            ],
            out_specs=pl.BlockSpec((output_size, TB), lambda i: (0, i)),
        ),
        compiler_params=pltpu.CompilerParams(
            # Batch tiles are independent -> shard across TCs on v7x when
            # B > tb gives >= 2 tiles.
            dimension_semantics=("parallel",),
            # Headroom above v5e's 16 MiB default scoped limit for large TB.
            vmem_limit_bytes=32 * 1024 * 1024,
        ),
        cost_estimate=cost,
    )(idx_t, wc, w2)

    return jnp.transpose(out_t[:, :B])


def _reference(x, beta, w1, w2):
    """Pure-JAX reference mirroring the PyTorch semantics (dense, unfused)."""
    z = x @ beta.T
    h = jax.nn.sigmoid(z @ w1.T)
    return h @ w2.T


if __name__ == "__main__":
    # Model hyperparameters implied by the module:
    #   alphabet |A| = 4, sequence length L = 8  ->  input_size = 32
    #   target_names = ["expression", "stability"] -> output_size = 2
    #   latent_dim = 2, hidden (nonlinear) width = 16
    alphabet = "ACGT"
    seq_len = 8
    A = len(alphabet)
    input_size = seq_len * A                    # 32
    target_names = ["expression", "stability"]
    output_size = len(target_names)             # 2
    latent_dim = 2
    hidden = 16
    batch = 2

    key = jax.random.PRNGKey(0)
    k_x, k_beta, k_w1, k_w2 = jax.random.split(key, 4)

    # Sequences -> flattened one-hot indices (seq_to_binary semantics).
    aa_idx = jax.random.randint(k_x, (batch, seq_len), 0, A)
    flat_idx = (jnp.arange(seq_len)[None, :] * A + aa_idx).astype(jnp.int32)

    # Dense one-hot only needed for the pure-JAX reference check.
    x = jnp.zeros((batch, input_size), jnp.float32)
    x = x.at[jnp.arange(batch)[:, None], flat_idx].set(1.0)

    # nn.Linear-style shapes: (out_features, in_features)
    beta = 0.1 * jax.random.normal(k_beta, (latent_dim, input_size), jnp.float32)
    w1 = 0.1 * jax.random.normal(k_w1, (hidden, latent_dim), jnp.float32)
    w2 = 0.1 * jax.random.normal(k_w2, (output_size, hidden), jnp.float32)

    # One-time parameter prep (latent-layer fusion, (out, in) orientation).
    wc, w2p = prepare_params(beta, w1, w2)

    y = torchdms_forward(flat_idx, wc, w2p)
    y = jax.block_until_ready(y)

    y_ref = _reference(x, beta, w1, w2)
    assert y.shape == (batch, output_size)
    assert jnp.allclose(y, y_ref, atol=1e-5, rtol=1e-5), (y, y_ref)

    # TODO(synk): regularization_loss / fix_gauge / monotonic parameter flooring
    # are training-time utilities with no forward-pass compute; not kernelized.
    print("KERNEL_OK")
</pallas_src>

<mosaic_0001>
module attributes {stable_mosaic.version = 11 : i64} {
  func.func @_forward_kernel(%arg0: i32, %arg1: memref<8x128xi32, #tpu.memory_space<vmem>>, %arg2: memref<16x32xf32, #tpu.memory_space<vmem>>, %arg3: memref<2x16xf32, #tpu.memory_space<vmem>>, %arg4: memref<2x128xf32, #tpu.memory_space<vmem>>) attributes {dimension_semantics = [#tpu.dimension_semantics<parallel>], iteration_bounds = array<i64: 1>, scalar_prefetch = 0 : i64, scratch_operands = 0 : i64, tpu.core_type = #tpu.core_type<tc>, window_params = [{transform_indices = @transform_0, window_bounds = array<i64: 8, 128>}, {pipeline_mode = #tpu.pipeline_mode<synchronous>, transform_indices = @transform_1, window_bounds = array<i64: 16, 32>}, {pipeline_mode = #tpu.pipeline_mode<synchronous>, transform_indices = @transform_2, window_bounds = array<i64: 2, 16>}, {transform_indices = @transform_3, window_bounds = array<i64: 2, 128>}]} {
    %c0 = arith.constant 0 : index
    %c0_0 = arith.constant 0 : index
    %0 = vector.load %arg1[%c0, %c0_0] : memref<8x128xi32, #tpu.memory_space<vmem>>, vector<8x128xi32>
    %1 = tpu.iota {dimensions = array<i32: 0>} : vector<32x128xi32>
    %2 = vector.extract_strided_slice %0 {offsets = [0, 0], sizes = [1, 128], strides = [1, 1]} : vector<8x128xi32> to vector<1x128xi32>
    %3 = vector.broadcast %2 : vector<1x128xi32> to vector<32x128xi32>
    %4 = arith.cmpi eq, %1, %3 : vector<32x128xi32>
    %5 = vector.extract_strided_slice %0 {offsets = [1, 0], sizes = [1, 128], strides = [1, 1]} : vector<8x128xi32> to vector<1x128xi32>
    %6 = vector.broadcast %5 : vector<1x128xi32> to vector<32x128xi32>
    %7 = arith.cmpi eq, %1, %6 : vector<32x128xi32>
    %8 = arith.ori %4, %7 : vector<32x128xi1>
    %9 = vector.extract_strided_slice %0 {offsets = [2, 0], sizes = [1, 128], strides = [1, 1]} : vector<8x128xi32> to vector<1x128xi32>
    %10 = vector.broadcast %9 : vector<1x128xi32> to vector<32x128xi32>
    %11 = arith.cmpi eq, %1, %10 : vector<32x128xi32>
    %12 = arith.ori %8, %11 : vector<32x128xi1>
    %13 = vector.extract_strided_slice %0 {offsets = [3, 0], sizes = [1, 128], strides = [1, 1]} : vector<8x128xi32> to vector<1x128xi32>
    %14 = vector.broadcast %13 : vector<1x128xi32> to vector<32x128xi32>
    %15 = arith.cmpi eq, %1, %14 : vector<32x128xi32>
    %16 = arith.ori %12, %15 : vector<32x128xi1>
    %17 = vector.extract_strided_slice %0 {offsets = [4, 0], sizes = [1, 128], strides = [1, 1]} : vector<8x128xi32> to vector<1x128xi32>
    %18 = vector.broadcast %17 : vector<1x128xi32> to vector<32x128xi32>
    %19 = arith.cmpi eq, %1, %18 : vector<32x128xi32>
    %20 = arith.ori %16, %19 : vector<32x128xi1>
    %21 = vector.extract_strided_slice %0 {offsets = [5, 0], sizes = [1, 128], strides = [1, 1]} : vector<8x128xi32> to vector<1x128xi32>
    %22 = vector.broadcast %21 : vector<1x128xi32> to vector<32x128xi32>
    %23 = arith.cmpi eq, %1, %22 : vector<32x128xi32>
    %24 = arith.ori %20, %23 : vector<32x128xi1>
    %25 = vector.extract_strided_slice %0 {offsets = [6, 0], sizes = [1, 128], strides = [1, 1]} : vector<8x128xi32> to vector<1x128xi32>
    %26 = vector.broadcast %25 : vector<1x128xi32> to vector<32x128xi32>
    %27 = arith.cmpi eq, %1, %26 : vector<32x128xi32>
    %28 = arith.ori %24, %27 : vector<32x128xi1>
    %29 = vector.extract_strided_slice %0 {offsets = [7, 0], sizes = [1, 128], strides = [1, 1]} : vector<8x128xi32> to vector<1x128xi32>
    %30 = vector.broadcast %29 : vector<1x128xi32> to vector<32x128xi32>
    %31 = arith.cmpi eq, %1, %30 : vector<32x128xi32>
    %32 = arith.ori %28, %31 : vector<32x128xi1>
    %33 = arith.extui %32 : vector<32x128xi1> to vector<32x128xi32>
    %34 = arith.sitofp %33 : vector<32x128xi32> to vector<32x128xf32>
    %c0_1 = arith.constant 0 : index
    %c0_2 = arith.constant 0 : index
    %35 = vector.load %arg2[%c0_1, %c0_2] : memref<16x32xf32, #tpu.memory_space<vmem>>, vector<16x32xf32>
    %cst = arith.constant dense<0.000000e+00> : vector<16x128xf32>
    %36 = tpu.matmul %35, %34, %cst {dimension_numbers = #tpu.dot_dimension_numbers<[1], [0], [0], [1], [0, 0, 1, 1], [], []>} : vector<16x32xf32>, vector<32x128xf32>, vector<16x128xf32> -> vector<16x128xf32>
    %37 = arith.negf %36 : vector<16x128xf32>
    %38 = math.exp %37 : vector<16x128xf32>
    %cst_3 = arith.constant 1.000000e+00 : f32
    %39 = vector.broadcast %cst_3 : f32 to vector<16x128xf32>
    %40 = arith.addf %39, %38 : vector<16x128xf32>
    %41 = arith.divf %39, %40 : vector<16x128xf32>
    %c0_4 = arith.constant 0 : index
    %c0_5 = arith.constant 0 : index
    %42 = vector.load %arg3[%c0_4, %c0_5] : memref<2x16xf32, #tpu.memory_space<vmem>>, vector<2x16xf32>
    %cst_6 = arith.constant dense<0.000000e+00> : vector<2x128xf32>
    %43 = tpu.matmul %42, %41, %cst_6 {dimension_numbers = #tpu.dot_dimension_numbers<[1], [0], [0], [1], [0, 0, 1, 1], [], []>} : vector<2x16xf32>, vector<16x128xf32>, vector<2x128xf32> -> vector<2x128xf32>
    %c0_7 = arith.constant 0 : index
    %c0_8 = arith.constant 0 : index
    %44 = vector.load %arg4[%c0_7, %c0_8] : memref<2x128xf32, #tpu.memory_space<vmem>>, vector<2x128xf32>
    tpu.vector_store %arg4[%c0_7, %c0_8], %43 {strides = array<i32>} : memref<2x128xf32, #tpu.memory_space<vmem>>, vector<2x128xf32>,
    return
  }
  func.func @transform_0(%arg0: i32) -> (i32, i32) {
    %c0_i32 = arith.constant 0 : i32
    %c0_i32_0 = arith.constant 0 : i32
    return %c0_i32, %arg0 : i32, i32
  }
  func.func @transform_1(%arg0: i32) -> (i32, i32) {
    %c0_i32 = arith.constant 0 : i32
    %c0_i32_0 = arith.constant 0 : i32
    %c0_i32_1 = arith.constant 0 : i32
    return %c0_i32, %c0_i32_0 : i32, i32
  }
  func.func @transform_2(%arg0: i32) -> (i32, i32) {
    %c0_i32 = arith.constant 0 : i32
    %c0_i32_0 = arith.constant 0 : i32
    %c0_i32_1 = arith.constant 0 : i32
    return %c0_i32, %c0_i32_0 : i32, i32
  }
  func.func @transform_3(%arg0: i32) -> (i32, i32) {
    %c0_i32 = arith.constant 0 : i32
    %c0_i32_0 = arith.constant 0 : i32
    return %c0_i32, %arg0 : i32, i32
  }
}

</mosaic_0001>

<llo_original>
// kernel: torchdms_forward.1
$region0: #{torchdms_forward.1}
  #allocation0 [shape = 'u32[]', space=smem, size = 0x4, offset = 0x4, fixed_abs, tag = 'smem constant byte address 0x4 - core index']
  #allocation1 [shape = 'u32[144,128]{1,0:T(1,128)}', space=vmem, size = 0x12000, scoped, tag = 'internal scratch']
  %s0 = inlined_call_operand.vmem [shape: s32[8,128], index: 0, kind: input, shape index: {}]
  %s1 = inlined_call_operand.vmem [shape: f32[16,32], index: 1, kind: input, shape index: {}]
  %s2 = inlined_call_operand.vmem [shape: f32[2,16], index: 2, kind: input, shape index: {}]
  %s3 = inlined_call_operand.vmem [shape: f32[2,128], index: 3, kind: output, shape index: {}]
  %s4 = sld [smem:[#allocation0]]
  $region22: #{torchdms_forward.1} parent=0
    _
  %s6 = ssub.s32 1, %s4
  %s7 = scalar_select 0, %s6, %s4
  // Predicated region
  $region2: #{torchdms_forward.1} parent=0 // pred_check
    _
  $region3: #{torchdms_forward.1} parent=0 // pred_check_branch
    %9 = sbr.rel (0) target = $region5
  $region4: #{torchdms_forward.1} parent=0 // pred_region
    _
  $region5: #{torchdms_forward.1} parent=0 // pred_fallthru
    _
  // Predicated region
  $region6: #{torchdms_forward.1} parent=0 // pred_check
    _
  $region7: #{torchdms_forward.1} parent=0 // pred_check_branch
    %11 = sbr.rel (0) target = $region9
  $region8: #{torchdms_forward.1} parent=0 // pred_region
    _
  $region9: #{torchdms_forward.1} parent=0 // pred_fallthru
    _
  // Predicated region
  $region10: #{torchdms_forward.1} parent=0 // pred_check
    _
  $region11: #{torchdms_forward.1} parent=0 // pred_check_branch
    %13 = sbr.rel (0) target = $region13
  $region12: #{torchdms_forward.1} parent=0 // pred_region
    _
  $region13: #{torchdms_forward.1} parent=0 // pred_fallthru
    _
  %v14 = vld [vmem:[%s0] sm:$0xff]
  %v15 = vlaneseq
  %v16 = vshrl.u32 %v15, 7
  %v17 = vadd.s32 %v16, 8
  %v18 = vadd.s32 %v16, 16
  %v19 = vadd.s32 %v16, 24
  %v20 = vlaneseq
  %v21 = vshrl.u32 %v20, 7
  %v22 = vsub.s32 0, %v21
  %v23 = vrot.slane %v14, %v22
  %vm24 = vcmp.eq.s32.totalorder %v16, %v23
  %vm25 = vcmp.eq.s32.totalorder %v17, %v23
  %vm26 = vcmp.eq.s32.totalorder %v18, %v23
  %vm27 = vcmp.eq.s32.totalorder %v19, %v23
  %v28 = vlaneseq
  %v29 = vshrl.u32 %v28, 7
  %v30 = vsub.s32 1, %v29
  %v31 = vrot.slane %v14, %v30
  %vm32 = vcmp.eq.s32.totalorder %v16, %v31
  %vm33 = vcmp.eq.s32.totalorder %v17, %v31
  %vm34 = vcmp.eq.s32.totalorder %v18, %v31
  %vm35 = vcmp.eq.s32.totalorder %v19, %v31
  %vm36 = vmor %vm24, %vm32
  %vm37 = vmor %vm25, %vm33
  %vm38 = vmor %vm26, %vm34
  %vm39 = vmor %vm27, %vm35
  %v40 = vlaneseq
  %v41 = vshrl.u32 %v40, 7
  %v42 = vsub.s32 2, %v41
  %v43 = vrot.slane %v14, %v42
  %vm44 = vcmp.eq.s32.totalorder %v16, %v43
  %vm45 = vcmp.eq.s32.totalorder %v17, %v43
  %vm46 = vcmp.eq.s32.totalorder %v18, %v43
  %vm47 = vcmp.eq.s32.totalorder %v19, %v43
  %vm48 = vmor %vm36, %vm44
  %vm49 = vmor %vm37, %vm45
  %vm50 = vmor %vm38, %vm46
  %vm51 = vmor %vm39, %vm47
  %v52 = vlaneseq
  %v53 = vshrl.u32 %v52, 7
  %v54 = vsub.s32 3, %v53
  %v55 = vrot.slane %v14, %v54
  %vm56 = vcmp.eq.s32.totalorder %v16, %v55
  %vm57 = vcmp.eq.s32.totalorder %v17, %v55
  %vm58 = vcmp.eq.s32.totalorder %v18, %v55
  %vm59 = vcmp.eq.s32.totalorder %v19, %v55
  %vm60 = vmor %vm48, %vm56
  %vm61 = vmor %vm49, %vm57
  %vm62 = vmor %vm50, %vm58
  %vm63 = vmor %vm51, %vm59
  %v64 = vlaneseq
  %v65 = vshrl.u32 %v64, 7
  %v66 = vsub.s32 4, %v65
  %v67 = vrot.slane %v14, %v66
  %vm68 = vcmp.eq.s32.totalorder %v16, %v67
  %vm69 = vcmp.eq.s32.totalorder %v17, %v67
  %vm70 = vcmp.eq.s32.totalorder %v18, %v67
  %vm71 = vcmp.eq.s32.totalorder %v19, %v67
  %vm72 = vmor %vm60, %vm68
  %vm73 = vmor %vm61, %vm69
  %vm74 = vmor %vm62, %vm70
  %vm75 = vmor %vm63, %vm71
  %v76 = vlaneseq
  %v77 = vshrl.u32 %v76, 7
  %v78 = vsub.s32 5, %v77
  %v79 = vrot.slane %v14, %v78
  %vm80 = vcmp.eq.s32.totalorder %v16, %v79
  %vm81 = vcmp.eq.s32.totalorder %v17, %v79
  %vm82 = vcmp.eq.s32.totalorder %v18, %v79
  %vm83 = vcmp.eq.s32.totalorder %v19, %v79
  %vm84 = vmor %vm72, %vm80
  %vm85 = vmor %vm73, %vm81
  %vm86 = vmor %vm74, %vm82
  %vm87 = vmor %vm75, %vm83
  %v88 = vlaneseq
  %v89 = vshrl.u32 %v88, 7
  %v90 = vsub.s32 6, %v89
  %v91 = vrot.slane %v14, %v90
  %vm92 = vcmp.eq.s32.totalorder %v16, %v91
  %vm93 = vcmp.eq.s32.totalorder %v17, %v91
  %vm94 = vcmp.eq.s32.totalorder %v18, %v91
  %vm95 = vcmp.eq.s32.totalorder %v19, %v91
  %vm96 = vmor %vm84, %vm92
  %vm97 = vmor %vm85, %vm93
  %vm98 = vmor %vm86, %vm94
  %vm99 = vmor %vm87, %vm95
  %v100 = vlaneseq
  %v101 = vshrl.u32 %v100, 7
  %v102 = vsub.s32 7, %v101
  %v103 = vrot.slane %v14, %v102
  %vm104 = vcmp.eq.s32.totalorder %v16, %v103
  %vm105 = vcmp.eq.s32.totalorder %v17, %v103
  %vm106 = vcmp.eq.s32.totalorder %v18, %v103
  %vm107 = vcmp.eq.s32.totalorder %v19, %v103
  %vm108 = vmor %vm96, %vm104
  %vm109 = vmor %vm97, %vm105
  %vm110 = vmor %vm98, %vm106
  %vm111 = vmor %vm99, %vm107
  %v112 = vsel %vm108, 1, 0
  %v113 = vsel %vm109, 1, 0
  %v114 = vsel %vm110, 1, 0
  %v115 = vsel %vm111, 1, 0
  %v116 = vcvt.s32.f32 %v112
  %v117 = vcvt.s32.f32 %v113
  %v118 = vcvt.s32.f32 %v114
  %v119 = vcvt.s32.f32 %v115
  %v120 = vld [vmem:[%s1] sm:$0xff]
  %v121 = vld [vmem:[%s1 + $0x8] sm:$0xff]
  %vm122 = vcmask 261120
  %v124 = vsel %vm122, %v120, 0
  %v127 = vsel %vm122, %v121, 0
  %129 = vmatprep.subr.mxu0 0.0
  %130 = vmatpush1.msra.mxu0 %v116
  %131 = vmatprep.subr.mxu0 0.0
  %132 = vmatpush1.msra.mxu0 %v117
  %133 = vmatprep.subr.mxu0 0.0
  %134 = vmatpush1.msra.mxu0 %v118
  %135 = vmatprep.subr.mxu0 0.0
  %136 = vmatpush1.msra.mxu0 %v119
  %137 = vmatprep.subr.mxu0 0.0
  %138 = vmatpush1.msra.mxu0 0.0
  %139 = vmatprep.subr.mxu0 0.0
  %140 = vmatpush1.msra.mxu0 0.0
  %141 = vmatprep.subr.mxu0 0.0
  %142 = vmatpush1.msra.mxu0 0.0
  %143 = vmatprep.subr.mxu0 0.0
  %144 = vmatpush1.msra.mxu0 0.0
  %145 = vmatprep.subr.mxu0 0.0
  %146 = vmatpush1.msra.mxu0 0.0
  %147 = vmatprep.subr.mxu0 0.0
  %148 = vmatpush1.msra.mxu0 0.0
  %149 = vmatprep.subr.mxu0 0.0
  %150 = vmatpush1.msra.mxu0 0.0
  %151 = vmatprep.subr.mxu0 0.0
  %152 = vmatpush1.msra.mxu0 0.0
  %153 = vmatprep.subr.mxu0 0.0
  %154 = vmatpush1.msra.mxu0 0.0
  %155 = vmatprep.subr.mxu0 0.0
  %156 = vmatpush1.msra.mxu0 0.0
  %157 = vmatprep.subr.mxu0 0.0
  %158 = vmatpush1.msra.mxu0 0.0
  %159 = vmatprep.subr.mxu0 0.0
  %160 = vmatpush1.msra.mxu0 0.0
  %161 = vmatprep.subr.mxu0 0.0
  %162 = vmatpush1.msra.mxu0 0.0
  %163 = vmatprep.subr.mxu0 0.0
  %164 = vmatpush1.msra.mxu0 0.0
  %165 = vmatprep.subr.mxu0 0.0
  %166 = vmatpush1.msra.mxu0 0.0
  %167 = vmatprep.subr.mxu0 0.0
  %168 = vmatpush1.msra.mxu0 0.0
  %169 = vmatprep.subr.mxu0 0.0
  %170 = vmatpush1.msra.mxu0 0.0
  %171 = vmatprep.subr.mxu0 0.0
  %172 = vmatpush1.msra.mxu0 0.0
  %173 = vmatprep.subr.mxu0 0.0
  %174 = vmatpush1.msra.mxu0 0.0
  %175 = vmatprep.subr.mxu0 0.0
  %176 = vmatpush1.msra.mxu0 0.0
  %177 = vmatprep.subr.mxu0 0.0
  %178 = vmatpush1.msra.mxu0 0.0
  %179 = vmatprep.subr.mxu0 0.0
  %180 = vmatpush1.msra.mxu0 0.0
  %181 = vmatprep.subr.mxu0 0.0
  %182 = vmatpush1.msra.mxu0 0.0
  %183 = vmatprep.subr.mxu0 0.0
  %184 = vmatpush1.msra.mxu0 0.0
  %185 = vmatprep.subr.mxu0 0.0
  %186 = vmatpush1.msra.mxu0 0.0
  %187 = vmatprep.subr.mxu0 0.0
  %188 = vmatpush1.msra.mxu0 0.0
  %189 = vmatprep.subr.mxu0 0.0
  %190 = vmatpush1.msra.mxu0 0.0
  %191 = vmatprep.subr.mxu0 0.0
  %192 = vmatpush1.msra.mxu0 0.0
  %193 = vmatprep.mubr.f32.mxu0 0.0
  %194 = vmatmul.mubr.f32.gmra.mrb[0].mxu0 %v124
  %v195 = vpop.f32.mrb[0].mxu0
  %v196 = vadd.f32 0.0, %v195
  %v197 = vpop.f32.mrb[0].mxu0
  %198 = vmatprep.mubr.f32.mxu0 0.0
  %199 = vmatmul.mubr.f32.gmra.mrb[0].mxu0 %v127
  %v200 = vpop.f32.mrb[0].mxu0
  %v201 = vadd.f32 0.0, %v200
  %v202 = vpop.f32.mrb[0].mxu0
  %203 = vdwg.mxu0
  %v204 = vxor.u32 %v196, 2147483648
  %v205 = vxor.u32 %v201, 2147483648
  %v206 = vmul.f32 %v204, 1.442695
  %v207 = vpow.pop %v206
  %v208 = vmul.f32 %v205, 1.442695
  %v209 = vpow.pop %v208
  %v210 = vadd.f32 %v207, 1.0
  %v211 = vadd.f32 %v209, 1.0
  %v212 = vrcp.pop %v210
  %v213 = vmul.f32 1.0, %v212
  %v214 = vrcp.pop %v211
  %v215 = vmul.f32 1.0, %v214
  %v216 = vld [vmem:[%s2] sm:$0x3]
  %vm217 = vcmask 130048
  %v219 = vsel %vm217, %v216, 0
  %221 = vmatprep.subr.mxu0 0.0
  %222 = vmatpush1.msra.mxu0 %v213
  %223 = vmatprep.subr.mxu0 0.0
  %224 = vmatpush1.msra.mxu0 %v215
  %225 = vmatprep.subr.mxu0 0.0
  %226 = vmatpush1.msra.mxu0 0.0
  %227 = vmatprep.subr.mxu0 0.0
  %228 = vmatpush1.msra.mxu0 0.0
  %229 = vmatprep.subr.mxu0 0.0
  %230 = vmatpush1.msra.mxu0 0.0
  %231 = vmatprep.subr.mxu0 0.0
  %232 = vmatpush1.msra.mxu0 0.0
  %233 = vmatprep.subr.mxu0 0.0
  %234 = vmatpush1.msra.mxu0 0.0
  %235 = vmatprep.subr.mxu0 0.0
  %236 = vmatpush1.msra.mxu0 0.0
  %237 = vmatprep.subr.mxu0 0.0
  %238 = vmatpush1.msra.mxu0 0.0
  %239 = vmatprep.subr.mxu0 0.0
  %240 = vmatpush1.msra.mxu0 0.0
  %241 = vmatprep.subr.mxu0 0.0
  %242 = vmatpush1.msra.mxu0 0.0
  %243 = vmatprep.subr.mxu0 0.0
  %244 = vmatpush1.msra.mxu0 0.0
  %245 = vmatprep.subr.mxu0 0.0
  %246 = vmatpush1.msra.mxu0 0.0
  %247 = vmatprep.subr.mxu0 0.0
  %248 = vmatpush1.msra.mxu0 0.0
  %249 = vmatprep.subr.mxu0 0.0
  %250 = vmatpush1.msra.mxu0 0.0
  %251 = vmatprep.subr.mxu0 0.0
  %252 = vmatpush1.msra.mxu0 0.0
  %253 = vmatprep.subr.mxu0 0.0
  %254 = vmatpush1.msra.mxu0 0.0
  %255 = vmatprep.subr.mxu0 0.0
  %256 = vmatpush1.msra.mxu0 0.0
  %257 = vmatprep.subr.mxu0 0.0
  %258 = vmatpush1.msra.mxu0 0.0
  %259 = vmatprep.subr.mxu0 0.0
  %260 = vmatpush1.msra.mxu0 0.0
  %261 = vmatprep.subr.mxu0 0.0
  %262 = vmatpush1.msra.mxu0 0.0
  %263 = vmatprep.subr.mxu0 0.0
  %264 = vmatpush1.msra.mxu0 0.0
  %265 = vmatprep.subr.mxu0 0.0
  %266 = vmatpush1.msra.mxu0 0.0
  %267 = vmatprep.subr.mxu0 0.0
  %268 = vmatpush1.msra.mxu0 0.0
  %269 = vmatprep.subr.mxu0 0.0
  %270 = vmatpush1.msra.mxu0 0.0
  %271 = vmatprep.subr.mxu0 0.0
  %272 = vmatpush1.msra.mxu0 0.0
  %273 = vmatprep.subr.mxu0 0.0
  %274 = vmatpush1.msra.mxu0 0.0
  %275 = vmatprep.subr.mxu0 0.0
  %276 = vmatpush1.msra.mxu0 0.0
  %277 = vmatprep.subr.mxu0 0.0
  %278 = vmatpush1.msra.mxu0 0.0
  %279 = vmatprep.subr.mxu0 0.0
  %280 = vmatpush1.msra.mxu0 0.0
  %281 = vmatprep.subr.mxu0 0.0
  %282 = vmatpush1.msra.mxu0 0.0
  %283 = vmatprep.subr.mxu0 0.0
  %284 = vmatpush1.msra.mxu0 0.0
  %285 = vmatprep.mubr.f32.mxu0 0.0
  %286 = vmatmul.mubr.f32.gmra.mrb[0].mxu0 %v219
  %v287 = vpop.f32.mrb[0].mxu0
  %v288 = vadd.f32 0.0, %v287
  %v289 = vpop.f32.mrb[0].mxu0
  %290 = vdwg.mxu0
  %291 = vst [vmem:[%s3] sm:$0x3] %v288
  // Predicated region
  $region14: #{torchdms_forward.1} parent=0 // pred_check
    _
  $region15: #{torchdms_forward.1} parent=0 // pred_check_branch
    %293 = sbr.rel (0) target = $region17
  $region16: #{torchdms_forward.1} parent=0 // pred_region
    _
  $region17: #{torchdms_forward.1} parent=0 // pred_fallthru
    _
  // Predicated region
  $region18: #{torchdms_forward.1} parent=0 // pred_check
    _
  $region19: #{torchdms_forward.1} parent=0 // pred_check_branch
    %295 = sbr.rel (0) target = $region21
  $region20: #{torchdms_forward.1} parent=0 // pred_region
    _
  $region21: #{torchdms_forward.1} parent=0 // pred_fallthru
    _

</llo_original>
